<compile_context>
chip_gen: v7x
topology: tpu7x:2x2x1
jax: 0.10.0
libtpu: 0.0.40
codegen_flags: <defaults>
</compile_context>

<pallas_src>
import jax
import jax.numpy as jnp
from jax.experimental import pallas as pl
from jax.experimental.pallas import tpu as pltpu


def layernorm_kernel(x_ref, gamma_ref, beta_ref, o_ref):
    # x_ref: (row_tile, H) block in VMEM; normalize each row over H.
    x = x_ref[...].astype(jnp.float32)
    h_inv = 1.0 / x.shape[-1]
    # Single streaming pass: both reductions issue without a serial dependency.
    row_sum = jnp.sum(x, axis=-1, keepdims=True)
    row_sumsq = jnp.sum(x * x, axis=-1, keepdims=True)
    mean = row_sum * h_inv
    var = row_sumsq * h_inv - mean * mean
    var = jnp.maximum(var, 0.0)          # guard catastrophic cancellation
    inv = jax.lax.rsqrt(var + 1e-5)      # nn.LayerNorm default eps (EUP slot)
    gamma = gamma_ref[...].astype(jnp.float32)  # (1, H)
    beta = beta_ref[...].astype(jnp.float32)    # (1, H)
    # Fold scale/shift: out = x * s + (beta - mean * s), downcast in one expression.
    s = inv * gamma
    o_ref[...] = (x * s + (beta - mean * s)).astype(o_ref.dtype)


def _round_down_to_multiple(x, m):
    return max(m, (x // m) * m)


def _round_up_to_multiple(x, m):
    return ((x + m - 1) // m) * m


def _vmem_capacity_bytes():
    # Trace-time hardware query; fall back to the most restrictive generation
    # (v7x: 64 MiB per TensorCore) so a chosen limit fits everywhere.
    try:
        info = pltpu.get_tpu_info()
        cap = getattr(info, "vmem_capacity_bytes", None)
        if cap:
            return int(cap)
    except Exception:
        pass
    return 64 * 1024 * 1024


def _sublane_multiple(dtype_bytes):
    # Packed dtypes tile sublanes in pairs/quads: f32 -> 8, bf16 -> 16, int8/fp8 -> 32.
    return max(8, 32 // max(dtype_bytes, 1))


def _pick_row_tile(rows, H, dtype_bytes):
    """Row tile from a fixed ~3 MiB per-block byte target; dtype-aware sublane multiple."""
    sub = _sublane_multiple(dtype_bytes)
    # Per-block budget counts the input block plus its in-kernel f32 working copy.
    target_bytes = 3 * 1024 * 1024
    per_row = H * (dtype_bytes + 4)
    tile = target_bytes // max(per_row, 1)
    tile = min(tile, 2048)                       # roofline saturates well below this
    tile = _round_down_to_multiple(tile, sub)
    rows_rounded = _round_up_to_multiple(rows, sub)
    tile = min(tile, rows_rounded)
    # Prefer >= 4 grid steps (>= 2 per TensorCore on v7x) so both TCs get
    # double-buffered DMA/compute overlap.
    if rows_rounded >= 4 * sub:
        tile = min(tile, _round_down_to_multiple((rows_rounded + 3) // 4, sub))
    return max(tile, sub)


def layer_norm(x, gamma, beta, *, row_tile=None):
    """x: (..., H). gamma, beta: (H,). Returns same shape/dtype as x."""
    orig_shape = x.shape
    H = orig_shape[-1]
    rows = 1
    for d in orig_shape[:-1]:
        rows *= d
    x2 = x.reshape(rows, H)
    gamma2 = gamma.reshape(1, H)
    beta2 = beta.reshape(1, H)

    dtype_bytes = jnp.dtype(x.dtype).itemsize
    if row_tile is None:
        row_tile = _pick_row_tile(rows, H, dtype_bytes)
    grid = (pl.cdiv(rows, row_tile),)  # ragged tail block is masked by Pallas

    # Scoped-VMEM limit: double-buffered in+out blocks + f32 intermediates +
    # params + 16 MiB slack; clamped well below physical VMEM (headroom for
    # Mosaic internal scratch). Still a raise over v5e's 16 MiB scoped default.
    cap = _vmem_capacity_bytes()
    block_bytes = 4 * row_tile * H * dtype_bytes        # 2x in + 2x out, double-buffered
    f32_bytes = 2 * row_tile * H * 4                    # in-kernel f32 copy + temp
    param_bytes = 4 * H * 4                             # gamma/beta, double-buffered
    vmem_limit = block_bytes + f32_bytes + param_bytes + (16 << 20)
    vmem_limit = max(vmem_limit, 32 << 20)
    vmem_limit = min(vmem_limit, cap - (16 << 20))

    cost = pl.CostEstimate(
        flops=7 * rows * H,
        transcendentals=rows,                            # one rsqrt per row
        bytes_accessed=2 * rows * H * dtype_bytes + 2 * H * 4,
    )

    out = pl.pallas_call(
        layernorm_kernel,
        out_shape=jax.ShapeDtypeStruct((rows, H), x.dtype),
        grid_spec=pltpu.PrefetchScalarGridSpec(
            num_scalar_prefetch=0,
            grid=grid,
            in_specs=[
                pl.BlockSpec((row_tile, H), lambda i: (i, 0)),
                pl.BlockSpec((1, H), lambda i: (0, 0)),
                pl.BlockSpec((1, H), lambda i: (0, 0)),
            ],
            out_specs=pl.BlockSpec((row_tile, H), lambda i: (i, 0)),
        ),
        compiler_params=pltpu.CompilerParams(
            dimension_semantics=("parallel",),
            vmem_limit_bytes=vmem_limit,
        ),
        cost_estimate=cost,
    )(x2, gamma2, beta2)
    return out.reshape(orig_shape)


class LayerNormModule:
    """Mirrors the PyTorch LayerNorm module: ln(x) then dropout (inference = identity)."""

    def __init__(self, embed_size, drop_out=0.1):
        self.embed_size = embed_size
        self.drop_out = drop_out
        # nn.LayerNorm default init: weight = ones, bias = zeros (deterministic).
        self.gamma = jnp.ones((embed_size,), dtype=jnp.float32)
        self.beta = jnp.zeros((embed_size,), dtype=jnp.float32)

    def __call__(self, x):
        y = layer_norm(x, self.gamma, self.beta)
        # Dropout in inference mode is identity.
        # TODO(synk): fuse training-mode dropout into the kernel epilogue.
        return y


if __name__ == "__main__":
    batch, seq, hidden = 2, 8, 32
    key = jax.random.PRNGKey(0)
    x = jax.random.normal(key, (batch, seq, hidden), dtype=jnp.float32)

    module = LayerNormModule(embed_size=hidden, drop_out=0.1)
    out = module(x)
    out = jax.block_until_ready(out)

    # Sanity check against plain-JAX reference (centered two-pass form).
    mean = jnp.mean(x, axis=-1, keepdims=True)
    var = jnp.mean((x - mean) ** 2, axis=-1, keepdims=True)
    ref = (x - mean) * jax.lax.rsqrt(var + 1e-5) * module.gamma + module.beta
    assert out.shape == x.shape
    assert jnp.allclose(out, ref, atol=1e-5, rtol=1e-5)

    print("KERNEL_OK")
</pallas_src>

<mosaic_0001>
module attributes {stable_mosaic.version = 11 : i64} {
  func.func @layernorm_kernel(%arg0: i32, %arg1: memref<16x32xf32, #tpu.memory_space<vmem>>, %arg2: memref<1x32xf32, #tpu.memory_space<vmem>>, %arg3: memref<1x32xf32, #tpu.memory_space<vmem>>, %arg4: memref<16x32xf32, #tpu.memory_space<vmem>>) attributes {dimension_semantics = [#tpu.dimension_semantics<parallel>], iteration_bounds = array<i64: 1>, scalar_prefetch = 0 : i64, scratch_operands = 0 : i64, tpu.core_type = #tpu.core_type<tc>, window_params = [{transform_indices = @transform_0, window_bounds = array<i64: 16, 32>}, {pipeline_mode = #tpu.pipeline_mode<synchronous>, transform_indices = @transform_1, window_bounds = array<i64: 1, 32>}, {pipeline_mode = #tpu.pipeline_mode<synchronous>, transform_indices = @transform_2, window_bounds = array<i64: 1, 32>}, {transform_indices = @transform_3, window_bounds = array<i64: 16, 32>}]} {
    %c0 = arith.constant 0 : index
    %c0_0 = arith.constant 0 : index
    %0 = vector.load %arg1[%c0, %c0_0] : memref<16x32xf32, #tpu.memory_space<vmem>>, vector<16x32xf32>
    %cst = arith.constant dense<0.000000e+00> : vector<16xf32>
    %1 = vector.multi_reduction <add>, %0, %cst [1] : vector<16x32xf32> to vector<16xf32>
    %2 = vector.shape_cast %1 : vector<16xf32> to vector<16x1xf32>
    %3 = arith.mulf %0, %0 : vector<16x32xf32>
    %cst_1 = arith.constant dense<0.000000e+00> : vector<16xf32>
    %4 = vector.multi_reduction <add>, %3, %cst_1 [1] : vector<16x32xf32> to vector<16xf32>
    %5 = vector.shape_cast %4 : vector<16xf32> to vector<16x1xf32>
    %cst_2 = arith.constant 3.125000e-02 : f32
    %6 = vector.broadcast %cst_2 : f32 to vector<16x1xf32>
    %7 = arith.mulf %2, %6 : vector<16x1xf32>
    %cst_3 = arith.constant 3.125000e-02 : f32
    %8 = vector.broadcast %cst_3 : f32 to vector<16x1xf32>
    %9 = arith.mulf %5, %8 : vector<16x1xf32>
    %10 = arith.mulf %7, %7 : vector<16x1xf32>
    %11 = arith.subf %9, %10 : vector<16x1xf32>
    %cst_4 = arith.constant 0.000000e+00 : f32
    %12 = vector.broadcast %cst_4 : f32 to vector<16x1xf32>
    %13 = arith.maximumf %11, %12 : vector<16x1xf32>
    %cst_5 = arith.constant 9.99999974E-6 : f32
    %14 = vector.broadcast %cst_5 : f32 to vector<16x1xf32>
    %15 = arith.addf %13, %14 : vector<16x1xf32>
    %16 = math.rsqrt %15 : vector<16x1xf32>
    %c0_6 = arith.constant 0 : index
    %c0_7 = arith.constant 0 : index
    %17 = vector.load %arg2[%c0_6, %c0_7] : memref<1x32xf32, #tpu.memory_space<vmem>>, vector<1x32xf32>
    %c0_8 = arith.constant 0 : index
    %c0_9 = arith.constant 0 : index
    %18 = vector.load %arg3[%c0_8, %c0_9] : memref<1x32xf32, #tpu.memory_space<vmem>>, vector<1x32xf32>
    %19 = vector.broadcast %16 : vector<16x1xf32> to vector<16x32xf32>
    %20 = vector.broadcast %17 : vector<1x32xf32> to vector<16x32xf32>
    %21 = arith.mulf %19, %20 : vector<16x32xf32>
    %22 = arith.mulf %0, %21 : vector<16x32xf32>
    %23 = vector.broadcast %7 : vector<16x1xf32> to vector<16x32xf32>
    %24 = arith.mulf %23, %21 : vector<16x32xf32>
    %25 = vector.broadcast %18 : vector<1x32xf32> to vector<16x32xf32>
    %26 = arith.subf %25, %24 : vector<16x32xf32>
    %27 = arith.addf %22, %26 : vector<16x32xf32>
    %c0_10 = arith.constant 0 : index
    %c0_11 = arith.constant 0 : index
    %28 = vector.load %arg4[%c0_10, %c0_11] : memref<16x32xf32, #tpu.memory_space<vmem>>, vector<16x32xf32>
    tpu.vector_store %arg4[%c0_10, %c0_11], %27 {strides = array<i32>} : memref<16x32xf32, #tpu.memory_space<vmem>>, vector<16x32xf32>,
    return
  }
  func.func @transform_0(%arg0: i32) -> (i32, i32) {
    %c0_i32 = arith.constant 0 : i32
    %c0_i32_0 = arith.constant 0 : i32
    return %arg0, %c0_i32 : i32, i32
  }
  func.func @transform_1(%arg0: i32) -> (i32, i32) {
    %c0_i32 = arith.constant 0 : i32
    %c0_i32_0 = arith.constant 0 : i32
    %c0_i32_1 = arith.constant 0 : i32
    return %c0_i32, %c0_i32_0 : i32, i32
  }
  func.func @transform_2(%arg0: i32) -> (i32, i32) {
    %c0_i32 = arith.constant 0 : i32
    %c0_i32_0 = arith.constant 0 : i32
    %c0_i32_1 = arith.constant 0 : i32
    return %c0_i32, %c0_i32_0 : i32, i32
  }
  func.func @transform_3(%arg0: i32) -> (i32, i32) {
    %c0_i32 = arith.constant 0 : i32
    %c0_i32_0 = arith.constant 0 : i32
    return %arg0, %c0_i32 : i32, i32
  }
}

</mosaic_0001>

<llo_original>
// kernel: tpu_custom_call.1
$region0: #{tpu_custom_call.1}
  #allocation0 [shape = 'u32[]', space=smem, size = 0x4, offset = 0x4, fixed_abs, tag = 'smem constant byte address 0x4 - core index']
  #allocation1 [shape = 'u32[144,128]{1,0:T(1,128)}', space=vmem, size = 0x12000, scoped, tag = 'internal scratch']
  %s0 = inlined_call_operand.hbm [shape: f32[16,32], index: 0, kind: input, shape index: {}]
  %s1 = inlined_call_operand.vmem [shape: f32[1,32], index: 1, kind: input, shape index: {}]
  %s2 = inlined_call_operand.vmem [shape: f32[1,32], index: 2, kind: input, shape index: {}]
  %s3 = inlined_call_operand.hbm [shape: f32[16,32], index: 3, kind: output, shape index: {}]
  %s4 = sld [smem:[#allocation0]]
  $region26: #{tpu_custom_call.1} parent=0
    _
  %s6 = ssub.s32 1, %s4
  %s7 = scalar_select 0, %s6, %s4
  $region1: #{tpu_custom_call.1} parent=0
    #allocation2 [shape = 'u8[8192]{0}', space=vmem, size = 0x2000, scoped, tag = 'input window, operand 0, single buffered']
    #allocation3 [shape = 's32[1]{0}', space=sflag, size = 0x4, scoped, tag = 'scoped memory for tpu_custom_call.1']
    #allocation4 [shape = 's32[1]{0}', space=sflag, size = 0x4, scoped, tag = 'scoped memory for tpu_custom_call.1']
    #allocation5 [shape = 'u8[8192]{0}', space=vmem, size = 0x2000, scoped, tag = 'output window, operand 0, single buffered']
    %8 = vsyncpa [#allocation3], 0
    %9 = vsyncpa [#allocation4], 0
    // Predicated region
    $region2: #{tpu_custom_call.1} parent=1 // pred_check
      _
    $region3: #{tpu_custom_call.1} parent=1 // pred_check_branch
      %11 = sbr.rel (0) target = $region5
    $region4: #{tpu_custom_call.1} parent=1 // pred_region
      %s13 = ssub.s32 256, 256
      %14 = vsyncadd [#allocation3], %s13
      %s15 = sshll.u32 [#allocation2], 4
      %s16 = int_to_ptr.vmem [resolvable:$true] %s15
      %21 = dma.hbm_to_vmem [thread:$0]  %s0, 256, %s16, [#allocation3], 128, 128, 8
    $region5: #{tpu_custom_call.1} parent=1 // pred_fallthru
      _
    // Predicated region
    $region6: #{tpu_custom_call.1} parent=1 // pred_check
      _
    $region7: #{tpu_custom_call.1} parent=1 // pred_check_branch
      %23 = sbr.rel (0) target = $region9
    $region8: #{tpu_custom_call.1} parent=1 // pred_region
      _
    $region9: #{tpu_custom_call.1} parent=1 // pred_fallthru
      _
    // Predicated region
    $region10: #{tpu_custom_call.1} parent=1 // pred_check
      _
    $region11: #{tpu_custom_call.1} parent=1 // pred_check_branch
      %25 = sbr.rel (0) target = $region13
    $region12: #{tpu_custom_call.1} parent=1 // pred_region
      _
    $region13: #{tpu_custom_call.1} parent=1 // pred_fallthru
      _
    // Predicated region
    $region14: #{tpu_custom_call.1} parent=1 // pred_check
      _
    $region15: #{tpu_custom_call.1} parent=1 // pred_check_branch
      %27 = sbr.rel (0) target = $region17
    $region16: #{tpu_custom_call.1} parent=1 // pred_region
      %28 = dma.done [#allocation3], 256
    $region17: #{tpu_custom_call.1} parent=1 // pred_fallthru
      _
    %v29 = vld [vmem:[#allocation2] sm:$0xff]
    %v30 = vld [vmem:[#allocation2 + $0x8] sm:$0xff]
    %vm31 = vcmask 261120
    %v32 = vsel %vm31, %v29, 0.0
    %33 = vadd.xlane.f32.xlu0 %v32
    %v34 = vpop.xlane.xlu0 %33
    %v35 = vsel %vm31, %v30, 0.0
    %36 = vadd.xlane.f32.xlu0 %v35
    %v37 = vpop.xlane.xlu0 %36
    %v38 = vmul.f32 %v29, %v29
    %v39 = vmul.f32 %v30, %v30
    %v40 = vsel %vm31, %v38, 0.0
    %41 = vadd.xlane.f32.xlu0 %v40
    %v42 = vpop.xlane.xlu0 %41
    %v43 = vsel %vm31, %v39, 0.0
    %44 = vadd.xlane.f32.xlu0 %v43
    %v45 = vpop.xlane.xlu0 %44
    %v46 = vmul.f32 %v34, 0.03125
    %v47 = vmul.f32 %v37, 0.03125
    %v48 = vmul.f32 %v42, 0.03125
    %v49 = vmul.f32 %v45, 0.03125
    %v50 = vmul.f32 %v46, %v46
    %v51 = vmul.f32 %v47, %v47
    %v52 = vsub.f32 %v48, %v50
    %v53 = vsub.f32 %v49, %v51
    %v54 = vmax.f32 %v52, 0.0
    %v55 = vmax.f32 %v53, 0.0
    %v56 = vadd.f32 %v54, 1e-05
    %v57 = vadd.f32 %v55, 1e-05
    %v58 = vrsqrt.pop %v56
    %v59 = vrsqrt.pop %v57
    %v60 = vld [vmem:[%s1] sm:$0x1]
    %v61 = vld [vmem:[%s2] sm:$0x1]
    %v63 = vlaneseq
    %v64 = vshrl.u32 %v63, 7
    %v65 = vsub.s32 0, %v64
    %v66 = vrot.slane %v60, %v65
    %v68 = vmul.f32 %v58, %v66
    %v69 = vmul.f32 %v59, %v66
    %v70 = vmul.f32 %v29, %v68
    %v71 = vmul.f32 %v30, %v69
    %v72 = vmul.f32 %v46, %v68
    %v73 = vmul.f32 %v47, %v69
    %v75 = vlaneseq
    %v76 = vshrl.u32 %v75, 7
    %v77 = vsub.s32 0, %v76
    %v78 = vrot.slane %v61, %v77
    %v80 = vsub.f32 %v78, %v72
    %v81 = vsub.f32 %v78, %v73
    %v82 = vadd.f32 %v70, %v80
    %v83 = vadd.f32 %v71, %v81
    %84 = vst.msk [vmem:[#allocation5] sm:$0xff] %vm31, %v82
    %85 = vst.msk [vmem:[#allocation5 + $0x8] sm:$0xff] %vm31, %v83
    // Predicated region
    $region18: #{tpu_custom_call.1} parent=1 // pred_check
      _
    $region19: #{tpu_custom_call.1} parent=1 // pred_check_branch
      %87 = sbr.rel (0) target = $region21
    $region20: #{tpu_custom_call.1} parent=1 // pred_region
      %s89 = ssub.s32 256, 256
      %90 = vsyncadd [#allocation4], %s89
      %s91 = sshll.u32 [#allocation5], 4
      %s92 = int_to_ptr.vmem [resolvable:$true] %s91
      %97 = dma.vmem_to_hbm [thread:$0]  %s92, 256, %s3, [#allocation4], 128, 128, 8
    $region21: #{tpu_custom_call.1} parent=1 // pred_fallthru
      _
    // Predicated region
    $region22: #{tpu_custom_call.1} parent=1 // pred_check
      _
    $region23: #{tpu_custom_call.1} parent=1 // pred_check_branch
      %99 = sbr.rel (0) target = $region25
    $region24: #{tpu_custom_call.1} parent=1 // pred_region
      %100 = dma.done [#allocation4], 256
    $region25: #{tpu_custom_call.1} parent=1 // pred_fallthru
      _
    %101 = vsyncpa [#allocation3], 1
    %102 = vsyncpa [#allocation4], 1

</llo_original>
